<compile_context>
chip_gen: v5e
topology: v5e:2x2
jax: 0.10.0
libtpu: 0.0.40
codegen_flags: <defaults>
</compile_context>

<pallas_src>
import functools

import jax
import jax.numpy as jnp
from jax.experimental import pallas as pl
from jax.experimental.pallas import tpu as pltpu


def _light_mlp_kernel(inp_ref, score_ref, w1_ref, w2_ref, b2_ref, out_ref,
                      feat_ref, *, compute_dtype, precision):
    """Per-pixel MLP on a (C, TILE) channels-on-sublanes pixel tile.

    feat = [x(3); s(3); 1; 0] on sublanes; W1_packed has the effective hidden
    bias in column 6 and zeros in column 7, so one K=8 dot computes
    W1a^T x + W1b^T s + b1_eff with no separate broadcast-add.
    """
    t = feat_ref.shape[-1]

    # Pack the (8, TILE) streamed operand into VMEM scratch.
    feat_ref[0:3, :] = inp_ref[0]                       # rows 0-2: input channels
    feat_ref[3:6, :] = score_ref[0]                     # rows 3-5: score channels
    feat_ref[6:8, :] = (jax.lax.broadcasted_iota(jnp.int32, (2, t), 0) == 0
                        ).astype(jnp.float32)           # row 6: ones (bias), row 7: zeros

    feat = feat_ref[...].astype(compute_dtype)          # no-op for f32 path

    # Single fused K=8 MXU dot (bias folded into column 6 of w1_ref).
    h = jnp.dot(w1_ref[...], feat,
                preferred_element_type=jnp.float32, precision=precision)
    h = jnp.maximum(h, 0.0)                              # ReLU hidden activation

    out = jnp.dot(w2_ref[...], h.astype(compute_dtype),
                  preferred_element_type=jnp.float32, precision=precision)
    out_ref[0] = (out + b2_ref[...]).astype(out_ref.dtype)   # lane-dense store


def init_light_params(key, in_dim=9, hidden_dim=32, out_dim=3):
    """Deterministic synthetic imnet parameters: Linear(9,H) -> ReLU -> Linear(H,3)."""
    k1, k2 = jax.random.split(key)
    w1 = jax.random.normal(k1, (in_dim, hidden_dim), jnp.float32) * (2.0 / in_dim) ** 0.5
    b1 = jnp.zeros((1, hidden_dim), jnp.float32)
    w2 = jax.random.normal(k2, (hidden_dim, out_dim), jnp.float32) * (2.0 / hidden_dim) ** 0.5
    b2 = jnp.zeros((1, out_dim), jnp.float32)
    return w1, b1, w2, b2


def _choose_tile(n_pix, batch, tile_target, min_total_steps=4):
    """Pick a 128-multiple pixel tile that (a) splits n_pix evenly instead of
    padding a full extra step and (b) yields enough grid steps for 2 TCs."""
    tile_target = max(128, min(int(tile_target), 32768))
    max_steps = pl.cdiv(n_pix, 128)                    # can't go below 128 lanes/step
    n_steps = pl.cdiv(n_pix, tile_target)
    if batch * n_steps < min_total_steps:              # keep both v7x TensorCores busy
        n_steps = min(pl.cdiv(min_total_steps, batch), max_steps)
    tile = pl.cdiv(pl.cdiv(n_pix, n_steps), 128) * 128
    n_steps = pl.cdiv(n_pix, tile)
    return tile, n_steps


def light_forward(inp, score, noise_level, params, *, tile_n=16384,
                  compute_dtype=jnp.float32, precision=None):
    b, c, h, w = inp.shape
    w1, b1, w2, b2 = params
    hidden = w1.shape[1]
    out_dim = w2.shape[1]
    n_pix = h * w

    # Explicit matmul precision (never DEFAULT for f32 operands).
    if precision is None:
        precision = (jax.lax.Precision.HIGHEST if compute_dtype == jnp.float32
                     else jax.lax.Precision.DEFAULT)

    # Fold the constant noise branch into the hidden bias and pack everything
    # for the first layer into one (hidden, 8) weight: cols 0-2 inp, 3-5 score,
    # 6 effective bias (matched by a ones row in feat), 7 zero padding.
    noise = jnp.asarray(noise_level, jnp.float32)
    b1_eff = b1.reshape(-1) + noise * jnp.sum(w1[2 * c:3 * c], axis=0)   # (hidden,)
    w1_packed = jnp.concatenate(
        [jnp.transpose(w1[0:2 * c]),                 # (hidden, 6)
         b1_eff[:, None],                            # (hidden, 1) bias column
         jnp.zeros((hidden, 1), jnp.float32)],       # (hidden, 1) zero column
        axis=1).astype(compute_dtype)                # (hidden, 8)
    w2_t = jnp.transpose(w2).astype(compute_dtype)   # (out_dim, hidden)
    b2_col = b2.reshape(out_dim, 1)                  # f32, added after the dot

    # Channels-on-sublanes layout: free reshape of NCHW, no transposes.
    inp_f = inp.reshape(b, c, n_pix)
    score_f = score.reshape(b, c, n_pix)

    tile, n_steps = _choose_tile(n_pix, b, tile_n)
    n_pad = n_steps * tile
    if n_pad != n_pix:
        pad = n_pad - n_pix
        inp_f = jnp.pad(inp_f, ((0, 0), (0, 0), (0, pad)))
        score_f = jnp.pad(score_f, ((0, 0), (0, 0), (0, pad)))

    pix_map = lambda bi, ti: (bi, 0, ti)
    full = lambda bi, ti: (0, 0)

    kernel = functools.partial(_light_mlp_kernel,
                               compute_dtype=compute_dtype, precision=precision)

    out = pl.pallas_call(
        kernel,
        out_shape=jax.ShapeDtypeStruct((b, out_dim, n_pad), jnp.float32),
        grid=(b, n_steps),
        in_specs=[
            pl.BlockSpec((1, c, tile), pix_map),        # inp tile
            pl.BlockSpec((1, c, tile), pix_map),        # score tile
            pl.BlockSpec((hidden, 2 * c + 2), full),    # packed W1^T (+bias col)
            pl.BlockSpec((out_dim, hidden), full),      # W2^T
            pl.BlockSpec((out_dim, 1), full),           # output bias
        ],
        out_specs=pl.BlockSpec((1, out_dim, tile), pix_map),
        scratch_shapes=[pltpu.VMEM((2 * c + 2, tile), jnp.float32)],   # (8, TILE) feat
        compiler_params=pltpu.CompilerParams(
            dimension_semantics=("parallel", "parallel")),
    )(inp_f, score_f, w1_packed, w2_t, b2_col)

    # Drop pixel padding; reshape back to NCHW (free, no transpose).
    return out[:, :, :n_pix].reshape(b, out_dim, h, w)


def light_ref(inp, score, noise_level, params):
    """Pure-JAX reference of the PyTorch forward for numerical validation."""
    b, c, h, w = inp.shape
    w1, b1, w2, b2 = params
    weights = jnp.ones_like(inp) * noise_level
    x = jnp.concatenate([inp, score, weights], axis=1)          # (B,9,H,W)
    x = jnp.transpose(x, (0, 2, 3, 1)).reshape(-1, 3 * c)
    hdn = jnp.maximum(x @ w1 + b1, 0.0)
    out = hdn @ w2 + b2
    return out.reshape(b, h, w, -1).transpose(0, 3, 1, 2)


if __name__ == "__main__":
    key = jax.random.PRNGKey(0)
    k_inp, k_score, k_param = jax.random.split(key, 3)

    B, C, H, W = 2, 3, 16, 16          # in_dim = 3 per the module
    hidden_dim = 32                    # imnet_spec['args']['hidden_list'][0]
    noise_level = 0.1

    inp = jax.random.normal(k_inp, (B, C, H, W), jnp.float32)
    score = jax.random.normal(k_score, (B, C, H, W), jnp.float32)
    params = init_light_params(k_param, in_dim=9, hidden_dim=hidden_dim, out_dim=3)

    ref = light_ref(inp, score, noise_level, params)

    # f32-parity path (precision=HIGHEST) — must match PyTorch-style f32 Linear.
    out = jax.block_until_ready(light_forward(inp, score, noise_level, params))
    assert out.shape == (B, 3, H, W), out.shape
    assert jnp.allclose(out, ref, atol=1e-4, rtol=1e-4), float(jnp.abs(out - ref).max())

    # Fast path: bf16 MXU operands, f32 accumulation (single MXU pass); loose check.
    out_fast = jax.block_until_ready(
        light_forward(inp, score, noise_level, params, compute_dtype=jnp.bfloat16))
    assert out_fast.shape == (B, 3, H, W), out_fast.shape
    assert bool(jnp.isfinite(out_fast).all())
    assert jnp.allclose(out_fast, ref, atol=0.25, rtol=0.05), \
        float(jnp.abs(out_fast - ref).max())

    print("KERNEL_OK")
</pallas_src>

<mosaic_0001>
module attributes {stable_mosaic.version = 11 : i64} {
  func.func @_light_mlp_kernel(%arg0: i32, %arg1: i32, %arg2: memref<1x3x128xf32, #tpu.memory_space<vmem>>, %arg3: memref<1x3x128xf32, #tpu.memory_space<vmem>>, %arg4: memref<32x8xf32, #tpu.memory_space<vmem>>, %arg5: memref<3x32xf32, #tpu.memory_space<vmem>>, %arg6: memref<3x1xf32, #tpu.memory_space<vmem>>, %arg7: memref<1x3x128xf32, #tpu.memory_space<vmem>>, %arg8: memref<8x128xf32, #tpu.memory_space<vmem>>) attributes {dimension_semantics = [#tpu.dimension_semantics<parallel>, #tpu.dimension_semantics<parallel>], iteration_bounds = array<i64: 2, 2>, scalar_prefetch = 0 : i64, scratch_operands = 1 : i64, tpu.core_type = #tpu.core_type<tc>, window_params = [{transform_indices = @transform_0, window_bounds = array<i64: 1, 3, 128>}, {transform_indices = @transform_1, window_bounds = array<i64: 1, 3, 128>}, {pipeline_mode = #tpu.pipeline_mode<synchronous>, transform_indices = @transform_2, window_bounds = array<i64: 32, 8>}, {pipeline_mode = #tpu.pipeline_mode<synchronous>, transform_indices = @transform_3, window_bounds = array<i64: 3, 32>}, {pipeline_mode = #tpu.pipeline_mode<synchronous>, transform_indices = @transform_4, window_bounds = array<i64: 3, 1>}, {transform_indices = @transform_5, window_bounds = array<i64: 1, 3, 128>}]} {
    %c0 = arith.constant 0 : index
    %c0_0 = arith.constant 0 : index
    %c0_1 = arith.constant 0 : index
    %0 = vector.load %arg2[%c0, %c0_0, %c0_1] : memref<1x3x128xf32, #tpu.memory_space<vmem>>, vector<1x3x128xf32>
    %1 = vector.shape_cast %0 : vector<1x3x128xf32> to vector<3x128xf32>
    %c0_2 = arith.constant 0 : index
    %c0_3 = arith.constant 0 : index
    %2 = vector.load %arg8[%c0_2, %c0_3] : memref<8x128xf32, #tpu.memory_space<vmem>>, vector<3x128xf32>
    tpu.vector_store %arg8[%c0_2, %c0_3], %1 {strides = array<i32>} : memref<8x128xf32, #tpu.memory_space<vmem>>, vector<3x128xf32>,
    %c0_4 = arith.constant 0 : index
    %c0_5 = arith.constant 0 : index
    %c0_6 = arith.constant 0 : index
    %3 = vector.load %arg3[%c0_4, %c0_5, %c0_6] : memref<1x3x128xf32, #tpu.memory_space<vmem>>, vector<1x3x128xf32>
    %4 = vector.shape_cast %3 : vector<1x3x128xf32> to vector<3x128xf32>
    %c3 = arith.constant 3 : index
    %c0_7 = arith.constant 0 : index
    %5 = vector.load %arg8[%c3, %c0_7] : memref<8x128xf32, #tpu.memory_space<vmem>>, vector<3x128xf32>
    tpu.vector_store %arg8[%c3, %c0_7], %4 {strides = array<i32>} : memref<8x128xf32, #tpu.memory_space<vmem>>, vector<3x128xf32>,
    %6 = tpu.iota {dimensions = array<i32: 0>} : vector<2x128xi32>
    %c0_i32 = arith.constant 0 : i32
    %7 = vector.broadcast %c0_i32 : i32 to vector<2x128xi32>
    %8 = arith.cmpi eq, %6, %7 : vector<2x128xi32>
    %9 = arith.extui %8 : vector<2x128xi1> to vector<2x128xi32>
    %10 = arith.sitofp %9 : vector<2x128xi32> to vector<2x128xf32>
    %c6 = arith.constant 6 : index
    %c0_8 = arith.constant 0 : index
    %11 = vector.load %arg8[%c6, %c0_8] : memref<8x128xf32, #tpu.memory_space<vmem>>, vector<2x128xf32>
    tpu.vector_store %arg8[%c6, %c0_8], %10 {strides = array<i32>} : memref<8x128xf32, #tpu.memory_space<vmem>>, vector<2x128xf32>,
    %c0_9 = arith.constant 0 : index
    %c0_10 = arith.constant 0 : index
    %12 = vector.load %arg8[%c0_9, %c0_10] : memref<8x128xf32, #tpu.memory_space<vmem>>, vector<8x128xf32>
    %c0_11 = arith.constant 0 : index
    %c0_12 = arith.constant 0 : index
    %13 = vector.load %arg4[%c0_11, %c0_12] : memref<32x8xf32, #tpu.memory_space<vmem>>, vector<32x8xf32>
    %cst = arith.constant dense<0.000000e+00> : vector<32x128xf32>
    %14 = tpu.matmul %13, %12, %cst {dimension_numbers = #tpu.dot_dimension_numbers<[1], [0], [0], [1], [0, 0, 1, 1], [], []>, precision = #tpu.contract_precision<fp32>} : vector<32x8xf32>, vector<8x128xf32>, vector<32x128xf32> -> vector<32x128xf32>
    %cst_13 = arith.constant 0.000000e+00 : f32
    %15 = vector.broadcast %cst_13 : f32 to vector<32x128xf32>
    %16 = arith.maximumf %14, %15 : vector<32x128xf32>
    %c0_14 = arith.constant 0 : index
    %c0_15 = arith.constant 0 : index
    %17 = vector.load %arg5[%c0_14, %c0_15] : memref<3x32xf32, #tpu.memory_space<vmem>>, vector<3x32xf32>
    %cst_16 = arith.constant dense<0.000000e+00> : vector<3x128xf32>
    %18 = tpu.matmul %17, %16, %cst_16 {dimension_numbers = #tpu.dot_dimension_numbers<[1], [0], [0], [1], [0, 0, 1, 1], [], []>, precision = #tpu.contract_precision<fp32>} : vector<3x32xf32>, vector<32x128xf32>, vector<3x128xf32> -> vector<3x128xf32>
    %c0_17 = arith.constant 0 : index
    %c0_18 = arith.constant 0 : index
    %19 = vector.load %arg6[%c0_17, %c0_18] : memref<3x1xf32, #tpu.memory_space<vmem>>, vector<3x1xf32>
    %20 = vector.broadcast %19 : vector<3x1xf32> to vector<3x128xf32>
    %21 = arith.addf %18, %20 : vector<3x128xf32>
    %c0_19 = arith.constant 0 : index
    %c0_20 = arith.constant 0 : index
    %c0_21 = arith.constant 0 : index
    %22 = vector.load %arg7[%c0_19, %c0_20, %c0_21] : memref<1x3x128xf32, #tpu.memory_space<vmem>>, vector<1x3x128xf32>
    %23 = vector.shape_cast %22 : vector<1x3x128xf32> to vector<3x128xf32>
    %24 = vector.shape_cast %21 : vector<3x128xf32> to vector<1x3x128xf32>
    tpu.vector_store %arg7[%c0_19, %c0_20, %c0_21], %24 {strides = array<i32>} : memref<1x3x128xf32, #tpu.memory_space<vmem>>, vector<1x3x128xf32>,
    return
  }
  func.func @transform_0(%arg0: i32, %arg1: i32) -> (i32, i32, i32) {
    %c0_i32 = arith.constant 0 : i32
    %c0_i32_0 = arith.constant 0 : i32
    return %arg0, %c0_i32, %arg1 : i32, i32, i32
  }
  func.func @transform_1(%arg0: i32, %arg1: i32) -> (i32, i32, i32) {
    %c0_i32 = arith.constant 0 : i32
    %c0_i32_0 = arith.constant 0 : i32
    return %arg0, %c0_i32, %arg1 : i32, i32, i32
  }
  func.func @transform_2(%arg0: i32, %arg1: i32) -> (i32, i32) {
    %c0_i32 = arith.constant 0 : i32
    %c0_i32_0 = arith.constant 0 : i32
    %c0_i32_1 = arith.constant 0 : i32
    return %c0_i32, %c0_i32_0 : i32, i32
  }
  func.func @transform_3(%arg0: i32, %arg1: i32) -> (i32, i32) {
    %c0_i32 = arith.constant 0 : i32
    %c0_i32_0 = arith.constant 0 : i32
    %c0_i32_1 = arith.constant 0 : i32
    return %c0_i32, %c0_i32_0 : i32, i32
  }
  func.func @transform_4(%arg0: i32, %arg1: i32) -> (i32, i32) {
    %c0_i32 = arith.constant 0 : i32
    %c0_i32_0 = arith.constant 0 : i32
    %c0_i32_1 = arith.constant 0 : i32
    return %c0_i32, %c0_i32_0 : i32, i32
  }
  func.func @transform_5(%arg0: i32, %arg1: i32) -> (i32, i32, i32) {
    %c0_i32 = arith.constant 0 : i32
    %c0_i32_0 = arith.constant 0 : i32
    return %arg0, %c0_i32, %arg1 : i32, i32, i32
  }
}

</mosaic_0001>

<llo_original>
// kernel: tpu_custom_call.1
$region0: #{tpu_custom_call.1}
  #allocation0 [shape = 'u32[]', space=smem, size = 0x4, offset = 0x4, fixed_abs, tag = 'smem constant byte address 0x4 - core index']
  #allocation1 [shape = 'u32[72,128]{1,0:T(1,128)}', space=vmem, size = 0x9000, scoped, tag = 'internal scratch']
  #allocation2 [shape = 'f32[8,128]{1,0:T(8,128)}', space=vmem, size = 0x1000, scoped, tag = 'scratch operand']
  %s0 = inlined_call_operand.vmem [shape: f32[2,3,256], index: 0, kind: input, shape index: {}]
  %s1 = inlined_call_operand.vmem [shape: f32[2,3,256], index: 1, kind: input, shape index: {}]
  %s2 = inlined_call_operand.vmem [shape: f32[32,8], index: 2, kind: input, shape index: {}]
  %s3 = inlined_call_operand.vmem [shape: f32[3,32], index: 3, kind: input, shape index: {}]
  %s4 = inlined_call_operand.vmem [shape: f32[3,1], index: 4, kind: input, shape index: {}]
  %s5 = inlined_call_operand.vmem [shape: f32[2,3,256], index: 5, kind: output, shape index: {}]
  %s6 = sld [smem:[#allocation0]]
  $region53: #{tpu_custom_call.1} parent=0
    _
  %s8 = ssub.s32 1, %s6
  %s9 = scalar_select 0, %s8, %s6
  loop: start=0, step=1, limit=6
  $region2: #{tpu_custom_call.1} parent=0 // loop_pre_header
    _
  $region3: #{tpu_custom_call.1} parent=0 // loop_header
    %s11 = sphi 0, %s15
    %p12 = scmp.ge.s32.totalorder %s11, 6
    %s18 = sphi 0, %s30
    %s19 = sphi 0, %s26
    %s20 = sphi 0, %s18
    %s21 = sphi 0, %s19
    %s22 = sphi 0, %s20
    %s23 = sphi 0, %s21
    %s35 = sphi 0, %s37
    %s38 = sphi 0, %s35
    %s39 = sphi 0, %s38
    %s55 = sphi 0, %s39
    %s63 = sphi 0, %s65
    %s66 = sphi 0, %s63
    %s67 = sphi 0, %s66
    %s83 = sphi 0, %s67
    %s87 = sphi 0, %s87
    %s89 = sphi 0, %s87
    %s90 = sphi 0, %s89
    %s104 = sphi 0, %s90
    %s108 = sphi 0, %s108
    %s110 = sphi 0, %s108
    %s111 = sphi 0, %s110
    %s125 = sphi 0, %s111
    %s129 = sphi 0, %s129
    %s131 = sphi 0, %s129
    %s132 = sphi 0, %s131
    %s146 = sphi 0, %s132
    %s154 = sphi 0, %s156
    %s157 = sphi 0, %s154
    %s158 = sphi 0, %s157
    %s174 = sphi 0, %s158
  $region4: #{tpu_custom_call.1} parent=0 // loop_header_branch
    %14 = sbr.rel (%p12) target = $region8
  $region5: #{tpu_custom_call.1} parent=0 // loop_body
    %s16 = ssub.s32 %s11, 1
    %s17 = ssub.s32 %s11, 2
    %s24 = sadd.s32 1, %s19
    %p25 = scmp.ge.s32.totalorder %s24, 2
    %s26 = scalar_select %p25, 0, %s24
    %s27 = sadd.s32 1, %s18
    %s28 = scalar_select %p25, %s27, %s18
    %p29 = scmp.ge.s32.totalorder %s28, 2
    %s30 = scalar_select %p29, 0, %s28
    %s31 = ssub.s32 %s18, %s30
    %s32 = ssub.s32 %s19, %s26
    %s33 = sor.u32 %s31, %s32
    %p34 = scmp.eq.s32.totalorder %s33, 0
    %s36 = sadd.s32 %s35, 1
    %s37 = scalar_select %p34, %s35, %s36
    %p40 = pneg %p34
    %p41 = scmp.eq.s32.totalorder %s11, 3
    %p42 = por %p40, %p41
    %p43 = scmp.ne.s32.totalorder %s35, %s38
    %p44 = scmp.eq.s32.totalorder %s11, 0
    %p45 = por %p43, %p44
    %p46 = scmp.ne.s32.totalorder %s35, %s38
    %p47 = scmp.eq.s32.totalorder %s16, 3
    %p48 = por %p46, %p47
    %p49 = scmp.ne.s32.totalorder %s38, %s39
    %p50 = scmp.eq.s32.totalorder %s16, 0
    %p51 = por %p49, %p50
    %p52 = scmp.ne.s32.totalorder %s38, %s39
    %p53 = scmp.eq.s32.totalorder %s17, 3
    %p54 = por %p52, %p53
    %p56 = scmp.ne.s32.totalorder %s39, %s55
    %p57 = scmp.eq.s32.totalorder %s17, 0
    %p58 = por %p56, %p57
    %s59 = ssub.s32 %s18, %s30
    %s60 = ssub.s32 %s19, %s26
    %s61 = sor.u32 %s59, %s60
    %p62 = scmp.eq.s32.totalorder %s61, 0
    %s64 = sadd.s32 %s63, 1
    %s65 = scalar_select %p62, %s63, %s64
    %p68 = pneg %p62
    %p69 = scmp.eq.s32.totalorder %s11, 3
    %p70 = por %p68, %p69
    %p71 = scmp.ne.s32.totalorder %s63, %s66
    %p72 = scmp.eq.s32.totalorder %s11, 0
    %p73 = por %p71, %p72
    %p74 = scmp.ne.s32.totalorder %s63, %s66
    %p75 = scmp.eq.s32.totalorder %s16, 3
    %p76 = por %p74, %p75
    %p77 = scmp.ne.s32.totalorder %s66, %s67
    %p78 = scmp.eq.s32.totalorder %s16, 0
    %p79 = por %p77, %p78
    %p80 = scmp.ne.s32.totalorder %s66, %s67
    %p81 = scmp.eq.s32.totalorder %s17, 3
    %p82 = por %p80, %p81
    %p84 = scmp.ne.s32.totalorder %s67, %s83
    %p85 = scmp.eq.s32.totalorder %s17, 0
    %p86 = por %p84, %p85
    %s88 = sadd.s32 %s87, 1
    %p91 = scmp.eq.s32.totalorder %s11, 3
    %p92 = scmp.ne.s32.totalorder %s87, %s89
    %p93 = scmp.eq.s32.totalorder %s11, 0
    %p94 = por %p92, %p93
    %p95 = scmp.ne.s32.totalorder %s87, %s89
    %p96 = scmp.eq.s32.totalorder %s16, 3
    %p97 = por %p95, %p96
    %p98 = scmp.ne.s32.totalorder %s89, %s90
    %p99 = scmp.eq.s32.totalorder %s16, 0
    %p100 = por %p98, %p99
    %p101 = scmp.ne.s32.totalorder %s89, %s90
    %p102 = scmp.eq.s32.totalorder %s17, 3
    %p103 = por %p101, %p102
    %p105 = scmp.ne.s32.totalorder %s90, %s104
    %p106 = scmp.eq.s32.totalorder %s17, 0
    %p107 = por %p105, %p106
    %s109 = sadd.s32 %s108, 1
    %p112 = scmp.eq.s32.totalorder %s11, 3
    %p113 = scmp.ne.s32.totalorder %s108, %s110
    %p114 = scmp.eq.s32.totalorder %s11, 0
    %p115 = por %p113, %p114
    %p116 = scmp.ne.s32.totalorder %s108, %s110
    %p117 = scmp.eq.s32.totalorder %s16, 3
    %p118 = por %p116, %p117
    %p119 = scmp.ne.s32.totalorder %s110, %s111
    %p120 = scmp.eq.s32.totalorder %s16, 0
    %p121 = por %p119, %p120
    %p122 = scmp.ne.s32.totalorder %s110, %s111
    %p123 = scmp.eq.s32.totalorder %s17, 3
    %p124 = por %p122, %p123
    %p126 = scmp.ne.s32.totalorder %s111, %s125
    %p127 = scmp.eq.s32.totalorder %s17, 0
    %p128 = por %p126, %p127
    %s130 = sadd.s32 %s129, 1
    %p133 = scmp.eq.s32.totalorder %s11, 3
    %p134 = scmp.ne.s32.totalorder %s129, %s131
    %p135 = scmp.eq.s32.totalorder %s11, 0
    %p136 = por %p134, %p135
    %p137 = scmp.ne.s32.totalorder %s129, %s131
    %p138 = scmp.eq.s32.totalorder %s16, 3
    %p139 = por %p137, %p138
    %p140 = scmp.ne.s32.totalorder %s131, %s132
    %p141 = scmp.eq.s32.totalorder %s16, 0
    %p142 = por %p140, %p141
    %p143 = scmp.ne.s32.totalorder %s131, %s132
    %p144 = scmp.eq.s32.totalorder %s17, 3
    %p145 = por %p143, %p144
    %p147 = scmp.ne.s32.totalorder %s132, %s146
    %p148 = scmp.eq.s32.totalorder %s17, 0
    %p149 = por %p147, %p148
    %s150 = ssub.s32 %s18, %s30
    %s151 = ssub.s32 %s19, %s26
    %s152 = sor.u32 %s150, %s151
    %p153 = scmp.eq.s32.totalorder %s152, 0
    %s155 = sadd.s32 %s154, 1
    %s156 = scalar_select %p153, %s154, %s155
    %p159 = pneg %p153
    %p160 = scmp.eq.s32.totalorder %s11, 3
    %p161 = por %p159, %p160
    %p162 = scmp.ne.s32.totalorder %s154, %s157
    %p163 = scmp.eq.s32.totalorder %s11, 0
    %p164 = por %p162, %p163
    %p165 = scmp.ne.s32.totalorder %s154, %s157
    %p166 = scmp.eq.s32.totalorder %s16, 3
    %p167 = por %p165, %p166
    %p168 = scmp.ne.s32.totalorder %s157, %s158
    %p169 = scmp.eq.s32.totalorder %s16, 0
    %p170 = por %p168, %p169
    %p171 = scmp.ne.s32.totalorder %s157, %s158
    %p172 = scmp.eq.s32.totalorder %s17, 3
    %p173 = por %p171, %p172
    %p175 = scmp.ne.s32.totalorder %s158, %s174
    %p176 = scmp.eq.s32.totalorder %s17, 0
    %p177 = por %p175, %p176
    %p178 = scmp.le.s32.totalorder 1, %s11
    %p179 = scmp.lt.s32.totalorder %s11, 5
    %p180 = pnand %p178, %p179
    %p181 = pneg %p180
    // Predicated region
    $region9: #{tpu_custom_call.1} parent=5 // pred_check
      _
    $region10: #{tpu_custom_call.1} parent=5 // pred_check_branch
      %183 = sbr.rel (%p180) target = $region12
    $region11: #{tpu_custom_call.1} parent=5 // pred_region
      %s184 = ssub.s32 %s11, 1
      // Predicated region
      $region13: #{tpu_custom_call.1} parent=11 // pred_check
        %p185 = pneg %p100
      $region14: #{tpu_custom_call.1} parent=11 // pred_check_branch
        %187 = sbr.rel (%p185) target = $region16
      $region15: #{tpu_custom_call.1} parent=11 // pred_region
        _
      $region16: #{tpu_custom_call.1} parent=11 // pred_fallthru
        _
      // Predicated region
      $region17: #{tpu_custom_call.1} parent=11 // pred_check
        %p188 = pneg %p121
      $region18: #{tpu_custom_call.1} parent=11 // pred_check_branch
        %190 = sbr.rel (%p188) target = $region20
      $region19: #{tpu_custom_call.1} parent=11 // pred_region
        _
      $region20: #{tpu_custom_call.1} parent=11 // pred_fallthru
        _
      // Predicated region
      $region21: #{tpu_custom_call.1} parent=11 // pred_check
        %p191 = pneg %p142
      $region22: #{tpu_custom_call.1} parent=11 // pred_check_branch
        %193 = sbr.rel (%p191) target = $region24
      $region23: #{tpu_custom_call.1} parent=11 // pred_region
        _
      $region24: #{tpu_custom_call.1} parent=11 // pred_fallthru
        _
    $region12: #{tpu_custom_call.1} parent=5 // pred_fallthru
      _
    %p194 = scmp.lt.s32.totalorder %s11, 4
    // Predicated region
    $region25: #{tpu_custom_call.1} parent=5 // pred_check
      %p195 = pneg %p194
    $region26: #{tpu_custom_call.1} parent=5 // pred_check_branch
      %197 = sbr.rel (%p195) target = $region28
    $region27: #{tpu_custom_call.1} parent=5 // pred_region
      // Predicated region
      $region29: #{tpu_custom_call.1} parent=27 // pred_check
        %p198 = pneg %p45
      $region30: #{tpu_custom_call.1} parent=27 // pred_check_branch
        %200 = sbr.rel (%p198) target = $region32
      $region31: #{tpu_custom_call.1} parent=27 // pred_region
        %p201 = scmp.lt.s32.totalorder %s18, 1
        %s202 = scalar_select %p201, %s18, 1
        %p203 = scmp.lt.s32.totalorder %s19, 1
        %s204 = scalar_select %p203, %s19, 1
        %s205 = smul.addr %s202, 2
        %s206 = sadd.s32 %s204, %s205
        %s207 = smul.addr %s206, 4
        %s208 = scalar_lea.vmem %s0, %s207
      $region32: #{tpu_custom_call.1} parent=27 // pred_fallthru
        _
      // Predicated region
      $region33: #{tpu_custom_call.1} parent=27 // pred_check
        %p209 = pneg %p73
      $region34: #{tpu_custom_call.1} parent=27 // pred_check_branch
        %211 = sbr.rel (%p209) target = $region36
      $region35: #{tpu_custom_call.1} parent=27 // pred_region
        %p212 = scmp.lt.s32.totalorder %s18, 1
        %s213 = scalar_select %p212, %s18, 1
        %p214 = scmp.lt.s32.totalorder %s19, 1
        %s215 = scalar_select %p214, %s19, 1
        %s216 = smul.addr %s213, 2
        %s217 = sadd.s32 %s215, %s216
        %s218 = smul.addr %s217, 4
        %s219 = scalar_lea.vmem %s1, %s218
      $region36: #{tpu_custom_call.1} parent=27 // pred_fallthru
        _
    $region28: #{tpu_custom_call.1} parent=5 // pred_fallthru
      _
    %p220 = scmp.le.s32.totalorder 1, %s11
    %p221 = scmp.lt.s32.totalorder %s11, 5
    %p222 = pnand %p220, %p221
    %p223 = pneg %p222
    // Predicated region
    $region37: #{tpu_custom_call.1} parent=5 // pred_check
      _
    $region38: #{tpu_custom_call.1} parent=5 // pred_check_branch
      %225 = sbr.rel (%p222) target = $region40
    $region39: #{tpu_custom_call.1} parent=5 // pred_region
      %s226 = ssub.s32 %s11, 1
      %p227 = scmp.lt.s32.totalorder %s20, 1
      %s228 = scalar_select %p227, %s20, 1
      %p229 = scmp.lt.s32.totalorder %s21, 1
      %s230 = scalar_select %p229, %s21, 1
      %s231 = smul.addr %s228, 2
      %s232 = sadd.s32 %s230, %s231
      %s233 = smul.addr %s232, 4
      %s234 = scalar_lea.vmem %s0, %s233
      %p235 = pneg %p51
      %p236 = pneg %p48
      %p237 = scmp.lt.s32.totalorder %s20, 1
      %s238 = scalar_select %p237, %s20, 1
      %p239 = scmp.lt.s32.totalorder %s21, 1
      %s240 = scalar_select %p239, %s21, 1
      %s241 = smul.addr %s238, 2
      %s242 = sadd.s32 %s240, %s241
      %s243 = smul.addr %s242, 4
      %s244 = scalar_lea.vmem %s1, %s243
      %p245 = pneg %p79
      %p246 = pneg %p76
      %p247 = pneg %p100
      %p248 = pneg %p97
      %p249 = pneg %p121
      %p250 = pneg %p118
      %p251 = pneg %p142
      %p252 = pneg %p139
      %p253 = pneg %p170
      %p254 = pneg %p167
      %p255 = scmp.lt.s32.totalorder %s20, 1
      %s256 = scalar_select %p255, %s20, 1
      %p257 = scmp.lt.s32.totalorder %s21, 1
      %s258 = scalar_select %p257, %s21, 1
      %s259 = smul.addr %s256, 2
      %s260 = sadd.s32 %s258, %s259
      %s261 = smul.addr %s260, 4
      %s262 = scalar_lea.vmem %s5, %s261
      %p263 = scmp.lt.s32.totalorder %s20, 1
      %s264 = scalar_select %p263, %s20, 1
      %p265 = scmp.lt.s32.totalorder %s21, 1
      %s266 = scalar_select %p265, %s21, 1
      %s267 = smul.addr %s264, 2
      %s268 = sadd.s32 %s266, %s267
      %s269 = smul.addr %s268, 4
      %s270 = scalar_lea.vmem %s0, %s269
      %p271 = scmp.lt.s32.totalorder %s20, 1
      %s272 = scalar_select %p271, %s20, 1
      %p273 = scmp.lt.s32.totalorder %s21, 1
      %s274 = scalar_select %p273, %s21, 1
      %s275 = smul.addr %s272, 2
      %s276 = sadd.s32 %s274, %s275
      %s277 = smul.addr %s276, 4
      %s278 = scalar_lea.vmem %s1, %s277
      %p279 = scmp.lt.s32.totalorder %s20, 1
      %s280 = scalar_select %p279, %s20, 1
      %p281 = scmp.lt.s32.totalorder %s21, 1
      %s282 = scalar_select %p281, %s21, 1
      %s283 = smul.addr %s280, 2
      %s284 = sadd.s32 %s282, %s283
      %s285 = smul.addr %s284, 4
      %s286 = scalar_lea.vmem %s5, %s285
      %v287 = vld [vmem:[%s270] sm:$0x7]
      %288 = vst [vmem:[#allocation2] sm:$0x7] %v287
      %v289 = vld [vmem:[%s278] sm:$0x7]
      %290 = vst [vmem:[#allocation2 + $0x3] sm:$0x7] %v289
      %v291 = vlaneseq
      %v292 = vshrl.u32 %v291, 7
      %vm293 = vcmp.eq.s32.totalorder %v292, 0
      %v294 = vsel %vm293, 1, 0
      %v295 = vcvt.s32.f32 %v294
      %296 = vst [vmem:[#allocation2 + $0x6] sm:$0x3] %v295
      %v297 = vld [vmem:[#allocation2] sm:$0xff]
      %v298 = vld [vmem:[%s2] sm:$0xff]
      %v299 = vld [vmem:[%s2 + $0x8] sm:$0xff]
      %v300 = vld [vmem:[%s2 + $0x10] sm:$0xff]
      %v301 = vld [vmem:[%s2 + $0x18] sm:$0xff]
      %vm302 = vcmask 64512
      %v304 = vsel %vm302, %v298, 0
      %v307 = vsel %vm302, %v299, 0
      %v310 = vsel %vm302, %v300, 0
      %v313 = vsel %vm302, %v301, 0
      %315 = vmatpush.msra.mxu0 0.0
      %316 = vmatpush.msra.mxu0 0.0
      %317 = vmatpush.msra.mxu0 0.0
      %318 = vmatpush.msra.mxu0 0.0
      %319 = vmatpush.msra.mxu0 0.0
      %320 = vmatpush.msra.mxu0 0.0
      %321 = vmatpush.msra.mxu0 0.0
      %322 = vmatpush.msra.mxu0 0.0
      %323 = vmatpush.msra.mxu0 0.0
      %324 = vmatpush.msra.mxu0 0.0
      %325 = vmatpush.msra.mxu0 0.0
      %326 = vmatpush.msra.mxu0 0.0
      %327 = vmatpush.msra.mxu0 0.0
      %328 = vmatpush.msra.mxu0 0.0
      %329 = vmatpush.msra.mxu0 0.0
      %v330 = vand.u32 %v297, 4294901760
      %331 = vmatpush.msra.mxu0 %v330
      %v332 = vand.u32 %v304, 4294901760
      %v333 = vsub.f32 %v304, %v332
      %v334 = vand.u32 %v333, 4294901760
      %v335 = vsub.f32 %v333, %v334
      %v336 = vand.u32 %v335, 4294901760
      %337 = vmatmul.f32.gmra.mxu0 %v336
      %v338 = vpop.f32.mrf.mxu0
      %v339 = vadd.f32 0.0, %v338
      %v340 = vand.u32 %v307, 4294901760
      %v341 = vsub.f32 %v307, %v340
      %v342 = vand.u32 %v341, 4294901760
      %v343 = vsub.f32 %v341, %v342
      %v344 = vand.u32 %v343, 4294901760
      %345 = vmatmul.f32.gmra.mxu0 %v344
      %v346 = vpop.f32.mrf.mxu0
      %v347 = vadd.f32 0.0, %v346
      %v348 = vand.u32 %v310, 4294901760
      %v349 = vsub.f32 %v310, %v348
      %v350 = vand.u32 %v349, 4294901760
      %v351 = vsub.f32 %v349, %v350
      %v352 = vand.u32 %v351, 4294901760
      %353 = vmatmul.f32.gmra.mxu0 %v352
      %v354 = vpop.f32.mrf.mxu0
      %v355 = vadd.f32 0.0, %v354
      %v356 = vand.u32 %v313, 4294901760
      %v357 = vsub.f32 %v313, %v356
      %v358 = vand.u32 %v357, 4294901760
      %v359 = vsub.f32 %v357, %v358
      %v360 = vand.u32 %v359, 4294901760
      %361 = vmatmul.f32.gmra.mxu0 %v360
      %v362 = vpop.f32.mrf.mxu0
      %v363 = vadd.f32 0.0, %v362
      %364 = vdwg.mxu0
      %365 = vmatpush.msra.mxu0 0.0
      %366 = vmatpush.msra.mxu0 0.0
      %367 = vmatpush.msra.mxu0 0.0
      %368 = vmatpush.msra.mxu0 0.0
      %369 = vmatpush.msra.mxu0 0.0
      %370 = vmatpush.msra.mxu0 0.0
      %371 = vmatpush.msra.mxu0 0.0
      %372 = vmatpush.msra.mxu0 0.0
      %373 = vmatpush.msra.mxu0 0.0
      %374 = vmatpush.msra.mxu0 0.0
      %375 = vmatpush.msra.mxu0 0.0
      %376 = vmatpush.msra.mxu0 0.0
      %377 = vmatpush.msra.mxu0 0.0
      %378 = vmatpush.msra.mxu0 0.0
      %379 = vmatpush.msra.mxu0 0.0
      %v380 = vand.u32 %v297, 4294901760
      %v381 = vsub.f32 %v297, %v380
      %v382 = vand.u32 %v381, 4294901760
      %v383 = vsub.f32 %v381, %v382
      %v384 = vand.u32 %v383, 4294901760
      %385 = vmatpush.msra.mxu0 %v384
      %v386 = vand.u32 %v304, 4294901760
      %387 = vmatmul.f32.gmra.mxu0 %v386
      %v388 = vpop.f32.mrf.mxu0
      %v389 = vadd.f32 %v339, %v388
      %v390 = vand.u32 %v307, 4294901760
      %391 = vmatmul.f32.gmra.mxu0 %v390
      %v392 = vpop.f32.mrf.mxu0
      %v393 = vadd.f32 %v347, %v392
      %v394 = vand.u32 %v310, 4294901760
      %395 = vmatmul.f32.gmra.mxu0 %v394
      %v396 = vpop.f32.mrf.mxu0
      %v397 = vadd.f32 %v355, %v396
      %v398 = vand.u32 %v313, 4294901760
      %399 = vmatmul.f32.gmra.mxu0 %v398
      %v400 = vpop.f32.mrf.mxu0
      %v401 = vadd.f32 %v363, %v400
      %402 = vdwg.mxu0
      %403 = vmatpush.msra.mxu0 0.0
      %404 = vmatpush.msra.mxu0 0.0
      %405 = vmatpush.msra.mxu0 0.0
      %406 = vmatpush.msra.mxu0 0.0
      %407 = vmatpush.msra.mxu0 0.0
      %408 = vmatpush.msra.mxu0 0.0
      %409 = vmatpush.msra.mxu0 0.0
      %410 = vmatpush.msra.mxu0 0.0
      %411 = vmatpush.msra.mxu0 0.0
      %412 = vmatpush.msra.mxu0 0.0
      %413 = vmatpush.msra.mxu0 0.0
      %414 = vmatpush.msra.mxu0 0.0
      %415 = vmatpush.msra.mxu0 0.0
      %416 = vmatpush.msra.mxu0 0.0
      %417 = vmatpush.msra.mxu0 0.0
      %v418 = vand.u32 %v297, 4294901760
      %v419 = vsub.f32 %v297, %v418
      %420 = vmatpush.msra.mxu0 %v419
      %v421 = vand.u32 %v304, 4294901760
      %v422 = vsub.f32 %v304, %v421
      %423 = vmatmul.f32.gmra.mxu0 %v422
      %v424 = vpop.f32.mrf.mxu0
      %v425 = vadd.f32 %v389, %v424
      %v426 = vand.u32 %v307, 4294901760
      %v427 = vsub.f32 %v307, %v426
      %428 = vmatmul.f32.gmra.mxu0 %v427
      %v429 = vpop.f32.mrf.mxu0
      %v430 = vadd.f32 %v393, %v429
      %v431 = vand.u32 %v310, 4294901760
      %v432 = vsub.f32 %v310, %v431
      %433 = vmatmul.f32.gmra.mxu0 %v432
      %v434 = vpop.f32.mrf.mxu0
      %v435 = vadd.f32 %v397, %v434
      %v436 = vand.u32 %v313, 4294901760
      %v437 = vsub.f32 %v313, %v436
      %438 = vmatmul.f32.gmra.mxu0 %v437
      %v439 = vpop.f32.mrf.mxu0
      %v440 = vadd.f32 %v401, %v439
      %441 = vdwg.mxu0
      %442 = vmatpush.msra.mxu0 0.0
      %443 = vmatpush.msra.mxu0 0.0
      %444 = vmatpush.msra.mxu0 0.0
      %445 = vmatpush.msra.mxu0 0.0
      %446 = vmatpush.msra.mxu0 0.0
      %447 = vmatpush.msra.mxu0 0.0
      %448 = vmatpush.msra.mxu0 0.0
      %449 = vmatpush.msra.mxu0 0.0
      %450 = vmatpush.msra.mxu0 0.0
      %451 = vmatpush.msra.mxu0 0.0
      %452 = vmatpush.msra.mxu0 0.0
      %453 = vmatpush.msra.mxu0 0.0
      %454 = vmatpush.msra.mxu0 0.0
      %455 = vmatpush.msra.mxu0 0.0
      %456 = vmatpush.msra.mxu0 0.0
      %v457 = vand.u32 %v297, 4294901760
      %458 = vmatpush.msra.mxu0 %v457
      %v459 = vand.u32 %v304, 4294901760
      %v460 = vsub.f32 %v304, %v459
      %v461 = vand.u32 %v460, 4294901760
      %462 = vmatmul.f32.gmra.mxu0 %v461
      %v463 = vpop.f32.mrf.mxu0
      %v464 = vadd.f32 %v425, %v463
      %v465 = vand.u32 %v307, 4294901760
      %v466 = vsub.f32 %v307, %v465
      %v467 = vand.u32 %v466, 4294901760
      %468 = vmatmul.f32.gmra.mxu0 %v467
      %v469 = vpop.f32.mrf.mxu0
      %v470 = vadd.f32 %v430, %v469
      %v471 = vand.u32 %v310, 4294901760
      %v472 = vsub.f32 %v310, %v471
      %v473 = vand.u32 %v472, 4294901760
      %474 = vmatmul.f32.gmra.mxu0 %v473
      %v475 = vpop.f32.mrf.mxu0
      %v476 = vadd.f32 %v435, %v475
      %v477 = vand.u32 %v313, 4294901760
      %v478 = vsub.f32 %v313, %v477
      %v479 = vand.u32 %v478, 4294901760
      %480 = vmatmul.f32.gmra.mxu0 %v479
      %v481 = vpop.f32.mrf.mxu0
      %v482 = vadd.f32 %v440, %v481
      %483 = vdwg.mxu0
      %484 = vmatpush.msra.mxu0 0.0
      %485 = vmatpush.msra.mxu0 0.0
      %486 = vmatpush.msra.mxu0 0.0
      %487 = vmatpush.msra.mxu0 0.0
      %488 = vmatpush.msra.mxu0 0.0
      %489 = vmatpush.msra.mxu0 0.0
      %490 = vmatpush.msra.mxu0 0.0
      %491 = vmatpush.msra.mxu0 0.0
      %492 = vmatpush.msra.mxu0 0.0
      %493 = vmatpush.msra.mxu0 0.0
      %494 = vmatpush.msra.mxu0 0.0
      %495 = vmatpush.msra.mxu0 0.0
      %496 = vmatpush.msra.mxu0 0.0
      %497 = vmatpush.msra.mxu0 0.0
      %498 = vmatpush.msra.mxu0 0.0
      %v499 = vand.u32 %v297, 4294901760
      %v500 = vsub.f32 %v297, %v499
      %v501 = vand.u32 %v500, 4294901760
      %502 = vmatpush.msra.mxu0 %v501
      %v503 = vand.u32 %v304, 4294901760
      %504 = vmatmul.f32.gmra.mxu0 %v503
      %v505 = vpop.f32.mrf.mxu0
      %v506 = vadd.f32 %v464, %v505
      %v507 = vand.u32 %v307, 4294901760
      %508 = vmatmul.f32.gmra.mxu0 %v507
      %v509 = vpop.f32.mrf.mxu0
      %v510 = vadd.f32 %v470, %v509
      %v511 = vand.u32 %v310, 4294901760
      %512 = vmatmul.f32.gmra.mxu0 %v511
      %v513 = vpop.f32.mrf.mxu0
      %v514 = vadd.f32 %v476, %v513
      %v515 = vand.u32 %v313, 4294901760
      %516 = vmatmul.f32.gmra.mxu0 %v515
      %v517 = vpop.f32.mrf.mxu0
      %v518 = vadd.f32 %v482, %v517
      %519 = vdwg.mxu0
      %520 = vmatpush.msra.mxu0 0.0
      %521 = vmatpush.msra.mxu0 0.0
      %522 = vmatpush.msra.mxu0 0.0
      %523 = vmatpush.msra.mxu0 0.0
      %524 = vmatpush.msra.mxu0 0.0
      %525 = vmatpush.msra.mxu0 0.0
      %526 = vmatpush.msra.mxu0 0.0
      %527 = vmatpush.msra.mxu0 0.0
      %528 = vmatpush.msra.mxu0 0.0
      %529 = vmatpush.msra.mxu0 0.0
      %530 = vmatpush.msra.mxu0 0.0
      %531 = vmatpush.msra.mxu0 0.0
      %532 = vmatpush.msra.mxu0 0.0
      %533 = vmatpush.msra.mxu0 0.0
      %534 = vmatpush.msra.mxu0 0.0
      %v535 = vand.u32 %v297, 4294901760
      %536 = vmatpush.msra.mxu0 %v535
      %v537 = vand.u32 %v304, 4294901760
      %538 = vmatmul.f32.gmra.mxu0 %v537
      %v539 = vpop.f32.mrf.mxu0
      %v540 = vadd.f32 %v506, %v539
      %v541 = vand.u32 %v307, 4294901760
      %542 = vmatmul.f32.gmra.mxu0 %v541
      %v543 = vpop.f32.mrf.mxu0
      %v544 = vadd.f32 %v510, %v543
      %v545 = vand.u32 %v310, 4294901760
      %546 = vmatmul.f32.gmra.mxu0 %v545
      %v547 = vpop.f32.mrf.mxu0
      %v548 = vadd.f32 %v514, %v547
      %v549 = vand.u32 %v313, 4294901760
      %550 = vmatmul.f32.gmra.mxu0 %v549
      %v551 = vpop.f32.mrf.mxu0
      %v552 = vadd.f32 %v518, %v551
      %553 = vdwg.mxu0
      %v554 = vmax.f32 %v540, 0.0
      %v555 = vmax.f32 %v544, 0.0
      %v556 = vmax.f32 %v548, 0.0
      %v557 = vmax.f32 %v552, 0.0
      %v558 = vld [vmem:[%s3] sm:$0x7]
      %v559 = vld [vmem:[%s4] sm:$0x7]
      %561 = vset.pattern.permute.xlu0 0
      %562 = vperm.xlu0 %561, %v559
      %v563 = vpop.permute.xlu0 %562
      %vm565 = vcmask 261120
      %v567 = vsel %vm565, %v558, 0
      %569 = vmatpush.msra.mxu0 0.0
      %570 = vmatpush.msra.mxu0 0.0
      %571 = vmatpush.msra.mxu0 0.0
      %572 = vmatpush.msra.mxu0 0.0
      %573 = vmatpush.msra.mxu0 0.0
      %574 = vmatpush.msra.mxu0 0.0
      %575 = vmatpush.msra.mxu0 0.0
      %576 = vmatpush.msra.mxu0 0.0
      %577 = vmatpush.msra.mxu0 0.0
      %578 = vmatpush.msra.mxu0 0.0
      %579 = vmatpush.msra.mxu0 0.0
      %580 = vmatpush.msra.mxu0 0.0
      %v581 = vand.u32 %v557, 4294901760
      %582 = vmatpush.msra.mxu0 %v581
      %v583 = vand.u32 %v556, 4294901760
      %584 = vmatpush.msra.mxu0 %v583
      %v585 = vand.u32 %v555, 4294901760
      %586 = vmatpush.msra.mxu0 %v585
      %v587 = vand.u32 %v554, 4294901760
      %588 = vmatpush.msra.mxu0 %v587
      %v589 = vand.u32 %v567, 4294901760
      %v590 = vsub.f32 %v567, %v589
      %v591 = vand.u32 %v590, 4294901760
      %v592 = vsub.f32 %v590, %v591
      %v593 = vand.u32 %v592, 4294901760
      %594 = vmatmul.f32.gmra.mxu0 %v593
      %v595 = vpop.f32.mrf.mxu0
      %v596 = vadd.f32 %v563, %v595
      %597 = vdwg.mxu0
      %598 = vmatpush.msra.mxu0 0.0
      %599 = vmatpush.msra.mxu0 0.0
      %600 = vmatpush.msra.mxu0 0.0
      %601 = vmatpush.msra.mxu0 0.0
      %602 = vmatpush.msra.mxu0 0.0
      %603 = vmatpush.msra.mxu0 0.0
      %604 = vmatpush.msra.mxu0 0.0
      %605 = vmatpush.msra.mxu0 0.0
      %606 = vmatpush.msra.mxu0 0.0
      %607 = vmatpush.msra.mxu0 0.0
      %608 = vmatpush.msra.mxu0 0.0
      %609 = vmatpush.msra.mxu0 0.0
      %v610 = vand.u32 %v557, 4294901760
      %v611 = vsub.f32 %v557, %v610
      %v612 = vand.u32 %v611, 4294901760
      %v613 = vsub.f32 %v611, %v612
      %v614 = vand.u32 %v613, 4294901760
      %615 = vmatpush.msra.mxu0 %v614
      %v616 = vand.u32 %v556, 4294901760
      %v617 = vsub.f32 %v556, %v616
      %v618 = vand.u32 %v617, 4294901760
      %v619 = vsub.f32 %v617, %v618
      %v620 = vand.u32 %v619, 4294901760
      %621 = vmatpush.msra.mxu0 %v620
      %v622 = vand.u32 %v555, 4294901760
      %v623 = vsub.f32 %v555, %v622
      %v624 = vand.u32 %v623, 4294901760
      %v625 = vsub.f32 %v623, %v624
      %v626 = vand.u32 %v625, 4294901760
      %627 = vmatpush.msra.mxu0 %v626
      %v628 = vand.u32 %v554, 4294901760
      %v629 = vsub.f32 %v554, %v628
      %v630 = vand.u32 %v629, 4294901760
      %v631 = vsub.f32 %v629, %v630
      %v632 = vand.u32 %v631, 4294901760
      %633 = vmatpush.msra.mxu0 %v632
      %v634 = vand.u32 %v567, 4294901760
      %635 = vmatmul.f32.gmra.mxu0 %v634
      %v636 = vpop.f32.mrf.mxu0
      %v637 = vadd.f32 %v596, %v636
      %638 = vdwg.mxu0
      %639 = vmatpush.msra.mxu0 0.0
      %640 = vmatpush.msra.mxu0 0.0
      %641 = vmatpush.msra.mxu0 0.0
      %642 = vmatpush.msra.mxu0 0.0
      %643 = vmatpush.msra.mxu0 0.0
      %644 = vmatpush.msra.mxu0 0.0
      %645 = vmatpush.msra.mxu0 0.0
      %646 = vmatpush.msra.mxu0 0.0
      %647 = vmatpush.msra.mxu0 0.0
      %648 = vmatpush.msra.mxu0 0.0
      %649 = vmatpush.msra.mxu0 0.0
      %650 = vmatpush.msra.mxu0 0.0
      %v651 = vand.u32 %v557, 4294901760
      %v652 = vsub.f32 %v557, %v651
      %653 = vmatpush.msra.mxu0 %v652
      %v654 = vand.u32 %v556, 4294901760
      %v655 = vsub.f32 %v556, %v654
      %656 = vmatpush.msra.mxu0 %v655
      %v657 = vand.u32 %v555, 4294901760
      %v658 = vsub.f32 %v555, %v657
      %659 = vmatpush.msra.mxu0 %v658
      %v660 = vand.u32 %v554, 4294901760
      %v661 = vsub.f32 %v554, %v660
      %662 = vmatpush.msra.mxu0 %v661
      %v663 = vand.u32 %v567, 4294901760
      %v664 = vsub.f32 %v567, %v663
      %665 = vmatmul.f32.gmra.mxu0 %v664
      %v666 = vpop.f32.mrf.mxu0
      %v667 = vadd.f32 %v637, %v666
      %668 = vdwg.mxu0
      %669 = vmatpush.msra.mxu0 0.0
      %670 = vmatpush.msra.mxu0 0.0
      %671 = vmatpush.msra.mxu0 0.0
      %672 = vmatpush.msra.mxu0 0.0
      %673 = vmatpush.msra.mxu0 0.0
      %674 = vmatpush.msra.mxu0 0.0
      %675 = vmatpush.msra.mxu0 0.0
      %676 = vmatpush.msra.mxu0 0.0
      %677 = vmatpush.msra.mxu0 0.0
      %678 = vmatpush.msra.mxu0 0.0
      %679 = vmatpush.msra.mxu0 0.0
      %680 = vmatpush.msra.mxu0 0.0
      %v681 = vand.u32 %v557, 4294901760
      %682 = vmatpush.msra.mxu0 %v681
      %v683 = vand.u32 %v556, 4294901760
      %684 = vmatpush.msra.mxu0 %v683
      %v685 = vand.u32 %v555, 4294901760
      %686 = vmatpush.msra.mxu0 %v685
      %v687 = vand.u32 %v554, 4294901760
      %688 = vmatpush.msra.mxu0 %v687
      %v689 = vand.u32 %v567, 4294901760
      %v690 = vsub.f32 %v567, %v689
      %v691 = vand.u32 %v690, 4294901760
      %692 = vmatmul.f32.gmra.mxu0 %v691
      %v693 = vpop.f32.mrf.mxu0
      %v694 = vadd.f32 %v667, %v693
      %695 = vdwg.mxu0
      %696 = vmatpush.msra.mxu0 0.0
      %697 = vmatpush.msra.mxu0 0.0
      %698 = vmatpush.msra.mxu0 0.0
      %699 = vmatpush.msra.mxu0 0.0
      %700 = vmatpush.msra.mxu0 0.0
      %701 = vmatpush.msra.mxu0 0.0
      %702 = vmatpush.msra.mxu0 0.0
      %703 = vmatpush.msra.mxu0 0.0
      %704 = vmatpush.msra.mxu0 0.0
      %705 = vmatpush.msra.mxu0 0.0
      %706 = vmatpush.msra.mxu0 0.0
      %707 = vmatpush.msra.mxu0 0.0
      %v708 = vand.u32 %v557, 4294901760
      %v709 = vsub.f32 %v557, %v708
      %v710 = vand.u32 %v709, 4294901760
      %711 = vmatpush.msra.mxu0 %v710
      %v712 = vand.u32 %v556, 4294901760
      %v713 = vsub.f32 %v556, %v712
      %v714 = vand.u32 %v713, 4294901760
      %715 = vmatpush.msra.mxu0 %v714
      %v716 = vand.u32 %v555, 4294901760
      %v717 = vsub.f32 %v555, %v716
      %v718 = vand.u32 %v717, 4294901760
      %719 = vmatpush.msra.mxu0 %v718
      %v720 = vand.u32 %v554, 4294901760
      %v721 = vsub.f32 %v554, %v720
      %v722 = vand.u32 %v721, 4294901760
      %723 = vmatpush.msra.mxu0 %v722
      %v724 = vand.u32 %v567, 4294901760
      %725 = vmatmul.f32.gmra.mxu0 %v724
      %v726 = vpop.f32.mrf.mxu0
      %v727 = vadd.f32 %v694, %v726
      %728 = vdwg.mxu0
      %729 = vmatpush.msra.mxu0 0.0
      %730 = vmatpush.msra.mxu0 0.0
      %731 = vmatpush.msra.mxu0 0.0
      %732 = vmatpush.msra.mxu0 0.0
      %733 = vmatpush.msra.mxu0 0.0
      %734 = vmatpush.msra.mxu0 0.0
      %735 = vmatpush.msra.mxu0 0.0
      %736 = vmatpush.msra.mxu0 0.0
      %737 = vmatpush.msra.mxu0 0.0
      %738 = vmatpush.msra.mxu0 0.0
      %739 = vmatpush.msra.mxu0 0.0
      %740 = vmatpush.msra.mxu0 0.0
      %v741 = vand.u32 %v557, 4294901760
      %742 = vmatpush.msra.mxu0 %v741
      %v743 = vand.u32 %v556, 4294901760
      %744 = vmatpush.msra.mxu0 %v743
      %v745 = vand.u32 %v555, 4294901760
      %746 = vmatpush.msra.mxu0 %v745
      %v747 = vand.u32 %v554, 4294901760
      %748 = vmatpush.msra.mxu0 %v747
      %v749 = vand.u32 %v567, 4294901760
      %750 = vmatmul.f32.gmra.mxu0 %v749
      %v751 = vpop.f32.mrf.mxu0
      %v752 = vadd.f32 %v727, %v751
      %753 = vdwg.mxu0
      %754 = vst [vmem:[%s286] sm:$0x7] %v752
      %p755 = scmp.lt.s32.totalorder %s20, 1
      %s756 = scalar_select %p755, %s20, 1
      %p757 = scmp.lt.s32.totalorder %s21, 1
      %s758 = scalar_select %p757, %s21, 1
      %s759 = smul.addr %s756, 2
      %s760 = sadd.s32 %s758, %s759
      %s761 = smul.addr %s760, 4
      %s762 = scalar_lea.vmem %s5, %s761
      // Predicated region
      $region41: #{tpu_custom_call.1} parent=39 // pred_check
        %p763 = pneg %p167
      $region42: #{tpu_custom_call.1} parent=39 // pred_check_branch
        %765 = sbr.rel (%p763) target = $region44
      $region43: #{tpu_custom_call.1} parent=39 // pred_region
        _
      $region44: #{tpu_custom_call.1} parent=39 // pred_fallthru
        _
    $region40: #{tpu_custom_call.1} parent=5 // pred_fallthru
      _
    %p766 = scmp.le.s32.totalorder 2, %s11
    // Predicated region
    $region45: #{tpu_custom_call.1} parent=5 // pred_check
      %p767 = pneg %p766
    $region46: #{tpu_custom_call.1} parent=5 // pred_check_branch
      %769 = sbr.rel (%p767) target = $region48
    $region47: #{tpu_custom_call.1} parent=5 // pred_region
      %s770 = ssub.s32 %s11, 2
      // Predicated region
      $region49: #{tpu_custom_call.1} parent=47 // pred_check
        %p771 = pneg %p173
      $region50: #{tpu_custom_call.1} parent=47 // pred_check_branch
        %773 = sbr.rel (%p771) target = $region52
      $region51: #{tpu_custom_call.1} parent=47 // pred_region
        %p774 = scmp.lt.s32.totalorder %s22, 1
        %s775 = scalar_select %p774, %s22, 1
        %p776 = scmp.lt.s32.totalorder %s23, 1
        %s777 = scalar_select %p776, %s23, 1
        %s778 = smul.addr %s775, 2
        %s779 = sadd.s32 %s777, %s778
        %s780 = smul.addr %s779, 4
        %s781 = scalar_lea.vmem %s5, %s780
      $region52: #{tpu_custom_call.1} parent=47 // pred_fallthru
        _
    $region48: #{tpu_custom_call.1} parent=5 // pred_fallthru
      _
  $region6: #{tpu_custom_call.1} parent=0 // loop_footer
    %s15 = sadd.s32 1, %s11
  $region7: #{tpu_custom_call.1} parent=0 // loop_footer_branch
    %10 = sbr.rel target = $region3
  $region8: #{tpu_custom_call.1} parent=0 // loop_exit
    _

</llo_original>
